<compile_context>
chip_gen: v6e
topology: v6e:2x2x1
jax: 0.10.0
libtpu: 0.0.40
codegen_flags: <defaults>
</compile_context>

<pallas_src>
import functools

import jax
import jax.numpy as jnp
from jax.experimental import pallas as pl
from jax.experimental.pallas import tpu as pltpu

NUM_CLASSES = 10
H1, H2 = 512, 256
K_PAD = 32          # layer-1 contraction dim: 2*NUM_CLASSES zero-padded up for the MXU


def _round_up(x, m):
    return (x + m - 1) // m * m


def _disc_kernel(probs_ref, labels_ref, w1_ref, w2_ref, w3_ref,
                 b12_ref, b3_ref, out_ref):
    probs = probs_ref[...]                                   # (TM, C) f32
    labels = labels_ref[...]                                 # (TM, 1) i32
    tm, c = probs.shape

    # Embedding lookup expressed as a one-hot; the embedding table is already folded
    # into w1_fused, so one K=32 matmul does "lookup + Linear(20, 512)".
    # tail lanes 0..9 carry one_hot(labels), lanes 10..21 are zero (K padding).
    tail_lanes = K_PAD - c
    lane = jax.lax.broadcasted_iota(jnp.int32, (tm, tail_lanes), 1)
    tail = (lane == labels).astype(jnp.float32)              # (TM, 22)
    x = jnp.concatenate([probs, tail], axis=1)               # (TM, 32)

    b1 = b12_ref[:, 0:H1]                                    # (1, 512) f32
    b2 = b12_ref[:, H1:H1 + H2]                              # (1, 256) f32
    b3 = b3_ref[0, 0]                                        # scalar (SMEM)

    # Linear(2C, 512) + LeakyReLU(0.2): bf16 operands, f32 accumulation.
    h = jnp.dot(x.astype(jnp.bfloat16), w1_ref[...],
                preferred_element_type=jnp.float32) + b1      # (TM, 512)
    h = jnp.where(h > 0, h, 0.2 * h)

    # Linear(512, 256) + LeakyReLU(0.2)
    h = jnp.dot(h.astype(jnp.bfloat16), w2_ref[...],
                preferred_element_type=jnp.float32) + b2      # (TM, 256)
    h = jnp.where(h > 0, h, 0.2 * h)

    # Linear(256, 1) as VPU mul + lane reduce (MXU would be 255/256 idle),
    # then Sigmoid via a single EUP tanh.
    logit = jnp.sum(h * w3_ref[...], axis=-1, keepdims=True) + b3   # (TM, 1)
    out_ref[...] = 0.5 * (jnp.tanh(0.5 * logit) + 1.0)


def prepare_params(params):
    """One-time: fold embedding into layer 1, zero-pad K to 32, pack biases, cast bf16."""
    C = NUM_CLASSES
    w1a = params["w1"][:C, :]                 # rows multiplying class_probs
    w1b = params["w1"][C:, :]                 # rows multiplying the label embedding
    w1_fused = jnp.concatenate(
        [w1a, params["embed"] @ w1b,
         jnp.zeros((K_PAD - 2 * C, H1), jnp.float32)], axis=0)         # (32, 512)
    return {
        "w1_fused": w1_fused.astype(jnp.bfloat16),                     # (32, 512)
        "w2": params["w2"].astype(jnp.bfloat16),                       # (512, 256)
        "w3_row": params["w3"].T.astype(jnp.float32),                  # (1, 256)
        "bias12": jnp.concatenate([params["b1"], params["b2"]],
                                  axis=1).astype(jnp.float32),         # (1, 768)
        "b3": params["b3"].astype(jnp.float32),                        # (1, 1) -> SMEM
    }


def _choose_tm(batch, tm_max):
    """Batch tile: big (amortize ~0.35us/step), multiple of 256, and guaranteeing
    >= 2 grid steps once the batch is large enough so both v7x TCs get work."""
    padded = _round_up(batch, 8)
    if padded <= 512:
        return padded                                  # tiny batch: one small block
    half = max(256, (padded // 2) // 256 * 256)        # ~B/2 rounded down to mult of 256
    return min(tm_max, half)


@functools.partial(jax.jit, static_argnames=("tm_max",))
def discriminator_forward(class_probs, labels, kparams, *, tm_max=2048):
    """class_probs: (B, NUM_CLASSES) f32, labels: (B,) i32 -> (B, 1) f32."""
    B = class_probs.shape[0]
    C = NUM_CLASSES

    probs = class_probs.astype(jnp.float32)
    labels2d = labels.reshape(B, 1).astype(jnp.int32)

    tm = _choose_tm(B, tm_max)
    grid = (pl.cdiv(B, tm),)          # ragged tail block; no wrapper-side jnp.pad copy

    batch_spec = lambda blk: pl.BlockSpec(blk, lambda i: (i, 0))
    resident = lambda shape: pl.BlockSpec(shape, lambda i: (0, 0))

    return pl.pallas_call(
        _disc_kernel,
        out_shape=jax.ShapeDtypeStruct((B, 1), jnp.float32),
        grid=grid,
        in_specs=[
            batch_spec((tm, C)),                           # class_probs tile
            batch_spec((tm, 1)),                           # labels tile
            resident((K_PAD, H1)),                         # w1_fused (bf16, K padded)
            resident((H1, H2)),                            # w2 (bf16)
            resident((1, H2)),                             # w3 row (f32)
            resident((1, H1 + H2)),                        # packed b1|b2
            pl.BlockSpec(memory_space=pltpu.MemorySpace.SMEM),   # b3 scalar
        ],
        out_specs=batch_spec((tm, 1)),
        compiler_params=pltpu.CompilerParams(
            dimension_semantics=("parallel",),
            vmem_limit_bytes=32 * 1024 * 1024),
    )(probs, labels2d, kparams["w1_fused"], kparams["w2"],
      kparams["w3_row"], kparams["bias12"], kparams["b3"])


def init_params(key):
    """Deterministic parameter init mirroring the PyTorch module's shapes."""
    ks = jax.random.split(key, 7)
    C = NUM_CLASSES

    def uniform(k, shape, fan_in):
        bound = 1.0 / jnp.sqrt(fan_in)
        return jax.random.uniform(k, shape, jnp.float32, -bound, bound)

    return {
        # nn.Embedding(num_classes, num_classes): N(0, 1)
        "embed": jax.random.normal(ks[0], (C, C), jnp.float32),
        # nn.Linear weights stored transposed (in, out) so forward is x @ W.
        # (A port of real PyTorch weights must transpose nn.Linear.weight.)
        "w1": uniform(ks[1], (2 * C, H1), 2 * C),
        "b1": uniform(ks[2], (1, H1), 2 * C),
        "w2": uniform(ks[3], (H1, H2), H1),
        "b2": uniform(ks[4], (1, H2), H1),
        "w3": uniform(ks[5], (H2, 1), H2),
        "b3": uniform(ks[6], (1, 1), H2),
    }


def reference_f32(class_probs, labels, params):
    """Original module semantics, pure f32 JAX (loose check vs bf16 kernel)."""
    emb = params["embed"][labels]
    x = jnp.concatenate([class_probs, emb], axis=1)
    h = x @ params["w1"] + params["b1"]
    h = jnp.where(h > 0, h, 0.2 * h)
    h = h @ params["w2"] + params["b2"]
    h = jnp.where(h > 0, h, 0.2 * h)
    return jax.nn.sigmoid(h @ params["w3"] + params["b3"])


def reference_matched(class_probs, labels, kparams):
    """Same math / precision as the kernel, in plain JAX (tight check)."""
    C = NUM_CLASSES
    B = class_probs.shape[0]
    one_hot = jax.nn.one_hot(labels, C, dtype=jnp.float32)
    kpad = jnp.zeros((B, K_PAD - 2 * C), jnp.float32)
    x = jnp.concatenate([class_probs.astype(jnp.float32), one_hot, kpad], axis=1)
    b1 = kparams["bias12"][:, :H1]
    b2 = kparams["bias12"][:, H1:H1 + H2]
    h = jnp.dot(x.astype(jnp.bfloat16), kparams["w1_fused"],
                preferred_element_type=jnp.float32) + b1
    h = jnp.where(h > 0, h, 0.2 * h)
    h = jnp.dot(h.astype(jnp.bfloat16), kparams["w2"],
                preferred_element_type=jnp.float32) + b2
    h = jnp.where(h > 0, h, 0.2 * h)
    logit = jnp.sum(h * kparams["w3_row"], axis=-1, keepdims=True) + kparams["b3"][0, 0]
    return 0.5 * (jnp.tanh(0.5 * logit) + 1.0)


if __name__ == "__main__":
    key = jax.random.PRNGKey(0)
    k_params, k_probs, k_labels, k_probs2, k_labels2 = jax.random.split(key, 5)

    params = init_params(k_params)
    kparams = prepare_params(params)

    # --- small batch (single grid step) ---
    B = 8
    class_probs = jax.nn.softmax(
        jax.random.normal(k_probs, (B, NUM_CLASSES), jnp.float32), axis=-1)
    labels = jax.random.randint(k_labels, (B,), 0, NUM_CLASSES, jnp.int32)

    validity = discriminator_forward(class_probs, labels, kparams)
    jax.block_until_ready(validity)
    assert validity.shape == (B, 1)

    # Tight check: identical math (bf16 weights / f32 accumulation) in plain JAX.
    ref_exact = reference_matched(class_probs, labels, kparams)
    assert jnp.allclose(validity, ref_exact, atol=1e-4, rtol=1e-4), \
        float(jnp.max(jnp.abs(validity - ref_exact)))

    # Loose check: original f32 PyTorch-module semantics (bf16 weight rounding).
    ref_f32 = reference_f32(class_probs, labels, params)
    assert float(jnp.max(jnp.abs(validity - ref_f32))) < 0.05, \
        float(jnp.max(jnp.abs(validity - ref_f32)))

    # --- ragged multi-step batch (B=600 -> tm=256, grid=(3,), ragged tail block) ---
    B2 = 600
    class_probs2 = jax.nn.softmax(
        jax.random.normal(k_probs2, (B2, NUM_CLASSES), jnp.float32), axis=-1)
    labels2 = jax.random.randint(k_labels2, (B2,), 0, NUM_CLASSES, jnp.int32)
    validity2 = discriminator_forward(class_probs2, labels2, kparams)
    jax.block_until_ready(validity2)
    assert validity2.shape == (B2, 1)
    ref2 = reference_matched(class_probs2, labels2, kparams)
    assert jnp.allclose(validity2, ref2, atol=1e-4, rtol=1e-4), \
        float(jnp.max(jnp.abs(validity2 - ref2)))

    print("KERNEL_OK")
</pallas_src>

<mosaic_0001>
module attributes {stable_mosaic.version = 11 : i64} {
  func.func @_disc_kernel(%arg0: i32, %arg1: memref<8x10xf32, #tpu.memory_space<vmem>>, %arg2: memref<8x1xi32, #tpu.memory_space<vmem>>, %arg3: memref<32x512xbf16, #tpu.memory_space<vmem>>, %arg4: memref<512x256xbf16, #tpu.memory_space<vmem>>, %arg5: memref<1x256xf32, #tpu.memory_space<vmem>>, %arg6: memref<1x768xf32, #tpu.memory_space<vmem>>, %arg7: memref<1x1xf32, #tpu.memory_space<smem>>, %arg8: memref<8x1xf32, #tpu.memory_space<vmem>>) attributes {dimension_semantics = [#tpu.dimension_semantics<parallel>], iteration_bounds = array<i64: 1>, scalar_prefetch = 0 : i64, scratch_operands = 0 : i64, tpu.core_type = #tpu.core_type<tc>, window_params = [{transform_indices = @transform_0, window_bounds = array<i64: 8, 10>}, {transform_indices = @transform_1, window_bounds = array<i64: 8, 1>}, {pipeline_mode = #tpu.pipeline_mode<synchronous>, transform_indices = @transform_2, window_bounds = array<i64: 32, 512>}, {pipeline_mode = #tpu.pipeline_mode<synchronous>, transform_indices = @transform_3, window_bounds = array<i64: 512, 256>}, {pipeline_mode = #tpu.pipeline_mode<synchronous>, transform_indices = @transform_4, window_bounds = array<i64: 1, 256>}, {pipeline_mode = #tpu.pipeline_mode<synchronous>, transform_indices = @transform_5, window_bounds = array<i64: 1, 768>}, {transform_indices = @transform_6, window_bounds = array<i64: 1, 1>}, {transform_indices = @transform_7, window_bounds = array<i64: 8, 1>}]} {
    %c0 = arith.constant 0 : index
    %c0_0 = arith.constant 0 : index
    %0 = vector.load %arg1[%c0, %c0_0] : memref<8x10xf32, #tpu.memory_space<vmem>>, vector<8x10xf32>
    %c0_1 = arith.constant 0 : index
    %c0_2 = arith.constant 0 : index
    %1 = vector.load %arg2[%c0_1, %c0_2] : memref<8x1xi32, #tpu.memory_space<vmem>>, vector<8x1xi32>
    %2 = tpu.iota {dimensions = array<i32: 1>} : vector<8x22xi32>
    %3 = vector.broadcast %1 : vector<8x1xi32> to vector<8x22xi32>
    %4 = arith.cmpi eq, %2, %3 : vector<8x22xi32>
    %5 = arith.extui %4 : vector<8x22xi1> to vector<8x22xi32>
    %6 = arith.sitofp %5 : vector<8x22xi32> to vector<8x22xf32>
    %7 = tpu.concatenate %0, %6 in 1 : vector<8x10xf32>, vector<8x22xf32> -> vector<8x32xf32>
    %c0_3 = arith.constant 0 : index
    %c0_4 = arith.constant 0 : index
    %8 = vector.load %arg6[%c0_3, %c0_4] : memref<1x768xf32, #tpu.memory_space<vmem>>, vector<1x512xf32>
    %c0_5 = arith.constant 0 : index
    %c512 = arith.constant 512 : index
    %9 = vector.load %arg6[%c0_5, %c512] : memref<1x768xf32, #tpu.memory_space<vmem>>, vector<1x256xf32>
    %c0_6 = arith.constant 0 : index
    %c0_7 = arith.constant 0 : index
    %10 = memref.load %arg7[%c0_6, %c0_7] : memref<1x1xf32, #tpu.memory_space<smem>>
    %11 = arith.truncf %7 : vector<8x32xf32> to vector<8x32xbf16>
    %c0_8 = arith.constant 0 : index
    %c0_9 = arith.constant 0 : index
    %12 = vector.load %arg3[%c0_8, %c0_9] : memref<32x512xbf16, #tpu.memory_space<vmem>>, vector<32x512xbf16>
    %cst = arith.constant dense<0.000000e+00> : vector<8x512xf32>
    %13 = tpu.matmul %11, %12, %cst {dimension_numbers = #tpu.dot_dimension_numbers<[1], [0], [0], [1], [0, 0, 1, 1], [], []>} : vector<8x32xbf16>, vector<32x512xbf16>, vector<8x512xf32> -> vector<8x512xf32>
    %14 = vector.broadcast %8 : vector<1x512xf32> to vector<8x512xf32>
    %15 = arith.addf %13, %14 : vector<8x512xf32>
    %cst_10 = arith.constant 0.000000e+00 : f32
    %16 = vector.broadcast %cst_10 : f32 to vector<8x512xf32>
    %17 = arith.cmpf ogt, %15, %16 : vector<8x512xf32>
    %cst_11 = arith.constant 2.000000e-01 : f32
    %18 = vector.broadcast %cst_11 : f32 to vector<8x512xf32>
    %19 = arith.mulf %18, %15 : vector<8x512xf32>
    %20 = arith.select %17, %15, %19 : vector<8x512xi1>, vector<8x512xf32>
    %21 = arith.truncf %20 : vector<8x512xf32> to vector<8x512xbf16>
    %c0_12 = arith.constant 0 : index
    %c0_13 = arith.constant 0 : index
    %22 = vector.load %arg4[%c0_12, %c0_13] : memref<512x256xbf16, #tpu.memory_space<vmem>>, vector<512x256xbf16>
    %cst_14 = arith.constant dense<0.000000e+00> : vector<8x256xf32>
    %23 = tpu.matmul %21, %22, %cst_14 {dimension_numbers = #tpu.dot_dimension_numbers<[1], [0], [0], [1], [0, 0, 1, 1], [], []>} : vector<8x512xbf16>, vector<512x256xbf16>, vector<8x256xf32> -> vector<8x256xf32>
    %24 = vector.broadcast %9 : vector<1x256xf32> to vector<8x256xf32>
    %25 = arith.addf %23, %24 : vector<8x256xf32>
    %cst_15 = arith.constant 0.000000e+00 : f32
    %26 = vector.broadcast %cst_15 : f32 to vector<8x256xf32>
    %27 = arith.cmpf ogt, %25, %26 : vector<8x256xf32>
    %cst_16 = arith.constant 2.000000e-01 : f32
    %28 = vector.broadcast %cst_16 : f32 to vector<8x256xf32>
    %29 = arith.mulf %28, %25 : vector<8x256xf32>
    %30 = arith.select %27, %25, %29 : vector<8x256xi1>, vector<8x256xf32>
    %c0_17 = arith.constant 0 : index
    %c0_18 = arith.constant 0 : index
    %31 = vector.load %arg5[%c0_17, %c0_18] : memref<1x256xf32, #tpu.memory_space<vmem>>, vector<1x256xf32>
    %32 = vector.broadcast %31 : vector<1x256xf32> to vector<8x256xf32>
    %33 = arith.mulf %30, %32 : vector<8x256xf32>
    %cst_19 = arith.constant dense<0.000000e+00> : vector<8xf32>
    %34 = vector.multi_reduction <add>, %33, %cst_19 [1] : vector<8x256xf32> to vector<8xf32>
    %35 = vector.shape_cast %34 : vector<8xf32> to vector<8x1xf32>
    %36 = vector.broadcast %10 : f32 to vector<8x1xf32>
    %37 = arith.addf %35, %36 : vector<8x1xf32>
    %cst_20 = arith.constant 5.000000e-01 : f32
    %38 = vector.broadcast %cst_20 : f32 to vector<8x1xf32>
    %39 = arith.mulf %38, %37 : vector<8x1xf32>
    %40 = math.tanh %39 : vector<8x1xf32>
    %cst_21 = arith.constant 1.000000e+00 : f32
    %41 = vector.broadcast %cst_21 : f32 to vector<8x1xf32>
    %42 = arith.addf %40, %41 : vector<8x1xf32>
    %cst_22 = arith.constant 5.000000e-01 : f32
    %43 = vector.broadcast %cst_22 : f32 to vector<8x1xf32>
    %44 = arith.mulf %43, %42 : vector<8x1xf32>
    %c0_23 = arith.constant 0 : index
    %c0_24 = arith.constant 0 : index
    %45 = vector.load %arg8[%c0_23, %c0_24] : memref<8x1xf32, #tpu.memory_space<vmem>>, vector<8x1xf32>
    tpu.vector_store %arg8[%c0_23, %c0_24], %44 {strides = array<i32>} : memref<8x1xf32, #tpu.memory_space<vmem>>, vector<8x1xf32>,
    return
  }
  func.func @transform_0(%arg0: i32) -> (i32, i32) {
    %c0_i32 = arith.constant 0 : i32
    %c0_i32_0 = arith.constant 0 : i32
    return %arg0, %c0_i32 : i32, i32
  }
  func.func @transform_1(%arg0: i32) -> (i32, i32) {
    %c0_i32 = arith.constant 0 : i32
    %c0_i32_0 = arith.constant 0 : i32
    return %arg0, %c0_i32 : i32, i32
  }
  func.func @transform_2(%arg0: i32) -> (i32, i32) {
    %c0_i32 = arith.constant 0 : i32
    %c0_i32_0 = arith.constant 0 : i32
    %c0_i32_1 = arith.constant 0 : i32
    return %c0_i32, %c0_i32_0 : i32, i32
  }
  func.func @transform_3(%arg0: i32) -> (i32, i32) {
    %c0_i32 = arith.constant 0 : i32
    %c0_i32_0 = arith.constant 0 : i32
    %c0_i32_1 = arith.constant 0 : i32
    return %c0_i32, %c0_i32_0 : i32, i32
  }
  func.func @transform_4(%arg0: i32) -> (i32, i32) {
    %c0_i32 = arith.constant 0 : i32
    %c0_i32_0 = arith.constant 0 : i32
    %c0_i32_1 = arith.constant 0 : i32
    return %c0_i32, %c0_i32_0 : i32, i32
  }
  func.func @transform_5(%arg0: i32) -> (i32, i32) {
    %c0_i32 = arith.constant 0 : i32
    %c0_i32_0 = arith.constant 0 : i32
    %c0_i32_1 = arith.constant 0 : i32
    return %c0_i32, %c0_i32_0 : i32, i32
  }
  func.func @transform_6(%arg0: i32) -> (i32, i32) {
    %c0_i32 = arith.constant 0 : i32
    %c0_i32_0 = arith.constant 0 : i32
    %c0_i32_1 = arith.constant 0 : i32
    return %c0_i32, %c0_i32_0 : i32, i32
  }
  func.func @transform_7(%arg0: i32) -> (i32, i32) {
    %c0_i32 = arith.constant 0 : i32
    %c0_i32_0 = arith.constant 0 : i32
    return %arg0, %c0_i32 : i32, i32
  }
}

</mosaic_0001>

<llo_original>
// kernel: discriminator_forward.1
$region0: #{discriminator_forward.1}
  #allocation0 [shape = 'u32[]', space=smem, size = 0x4, offset = 0x4, fixed_abs, tag = 'smem constant byte address 0x4 - core index']
  #allocation1 [shape = 'u32[144,128]{1,0:T(1,128)}', space=vmem, size = 0x12000, scoped, tag = 'internal scratch']
  #allocation2 [shape = 'f32[1,1]{1,0:T(1,128)S(6)}', space=smem, size = 0x200, scoped, tag = 'scoped memory for discriminator_forward.1']
  %s0 = inlined_call_operand.vmem [shape: f32[8,10], index: 0, kind: input, shape index: {}]
  %s1 = inlined_call_operand.vmem [shape: s32[8,1], index: 1, kind: input, shape index: {}]
  %s2 = inlined_call_operand.hbm [shape: bf16[32,512], index: 2, kind: input, shape index: {}]
  %s3 = inlined_call_operand.hbm [shape: bf16[512,256], index: 3, kind: input, shape index: {}]
  %s4 = inlined_call_operand.vmem [shape: f32[1,256], index: 4, kind: input, shape index: {}]
  %s5 = inlined_call_operand.vmem [shape: f32[1,768], index: 5, kind: input, shape index: {}]
  %s6 = inlined_call_operand.<no memory space> [shape: f32[1,1], index: 6, kind: input, shape index: {}]
  %s7 = inlined_call_operand.vmem [shape: f32[8,1], index: 7, kind: output, shape index: {}]
  %s8 = sld [smem:[#allocation0]]
  $region46: #{discriminator_forward.1} parent=0
    _
  %s10 = ssub.s32 1, %s8
  %s11 = scalar_select 0, %s10, %s8
  %12 = sst [smem:[#allocation2]] %s6
  $region1: #{discriminator_forward.1} parent=0
    #allocation3 [shape = 'u8[32768]{0}', space=vmem, size = 0x8000, scoped, tag = 'input window, operand 2, single buffered']
    #allocation4 [shape = 's32[1]{0}', space=sflag, size = 0x4, scoped, tag = 'scoped memory for discriminator_forward.1']
    #allocation5 [shape = 'u8[262144]{0}', space=vmem, size = 0x40000, scoped, tag = 'input window, operand 3, single buffered']
    #allocation6 [shape = 's32[1]{0}', space=sflag, size = 0x4, scoped, tag = 'scoped memory for discriminator_forward.1']
    %13 = vsyncpa [#allocation4], 0
    %14 = vsyncpa [#allocation6], 0
    // Predicated region
    $region2: #{discriminator_forward.1} parent=1 // pred_check
      _
    $region3: #{discriminator_forward.1} parent=1 // pred_check_branch
      %16 = sbr.rel (0) target = $region5
    $region4: #{discriminator_forward.1} parent=1 // pred_region
      _
    $region5: #{discriminator_forward.1} parent=1 // pred_fallthru
      _
    // Predicated region
    $region6: #{discriminator_forward.1} parent=1 // pred_check
      _
    $region7: #{discriminator_forward.1} parent=1 // pred_check_branch
      %18 = sbr.rel (0) target = $region9
    $region8: #{discriminator_forward.1} parent=1 // pred_region
      _
    $region9: #{discriminator_forward.1} parent=1 // pred_fallthru
      _
    // Predicated region
    $region10: #{discriminator_forward.1} parent=1 // pred_check
      _
    $region11: #{discriminator_forward.1} parent=1 // pred_check_branch
      %20 = sbr.rel (0) target = $region13
    $region12: #{discriminator_forward.1} parent=1 // pred_region
      %s22 = ssub.s32 1024, 1024
      %23 = vsyncadd [#allocation4], %s22
      %s24 = sshll.u32 [#allocation3], 4
      %s25 = int_to_ptr.vmem [resolvable:$true] %s24
      %30 = dma.hbm_to_vmem [thread:$0]  %s2, 1024, %s25, [#allocation4], 256, 256, 16
    $region13: #{discriminator_forward.1} parent=1 // pred_fallthru
      _
    // Predicated region
    $region14: #{discriminator_forward.1} parent=1 // pred_check
      _
    $region15: #{discriminator_forward.1} parent=1 // pred_check_branch
      %32 = sbr.rel (0) target = $region17
    $region16: #{discriminator_forward.1} parent=1 // pred_region
      %s34 = ssub.s32 8192, 8192
      %35 = vsyncadd [#allocation6], %s34
      %s36 = sshll.u32 [#allocation5], 4
      %s37 = int_to_ptr.vmem [resolvable:$true] %s36
      %42 = dma.hbm_to_vmem [thread:$0]  %s3, 8192, %s37, [#allocation6], 128, 128, 8
    $region17: #{discriminator_forward.1} parent=1 // pred_fallthru
      _
    // Predicated region
    $region18: #{discriminator_forward.1} parent=1 // pred_check
      _
    $region19: #{discriminator_forward.1} parent=1 // pred_check_branch
      %44 = sbr.rel (0) target = $region21
    $region20: #{discriminator_forward.1} parent=1 // pred_region
      _
    $region21: #{discriminator_forward.1} parent=1 // pred_fallthru
      _
    // Predicated region
    $region22: #{discriminator_forward.1} parent=1 // pred_check
      _
    $region23: #{discriminator_forward.1} parent=1 // pred_check_branch
      %46 = sbr.rel (0) target = $region25
    $region24: #{discriminator_forward.1} parent=1 // pred_region
      _
    $region25: #{discriminator_forward.1} parent=1 // pred_fallthru
      _
    // Predicated region
    $region26: #{discriminator_forward.1} parent=1 // pred_check
      _
    $region27: #{discriminator_forward.1} parent=1 // pred_check_branch
      %48 = sbr.rel (0) target = $region29
    $region28: #{discriminator_forward.1} parent=1 // pred_region
      _
    $region29: #{discriminator_forward.1} parent=1 // pred_fallthru
      _
    // Predicated region
    $region30: #{discriminator_forward.1} parent=1 // pred_check
      _
    $region31: #{discriminator_forward.1} parent=1 // pred_check_branch
      %50 = sbr.rel (0) target = $region33
    $region32: #{discriminator_forward.1} parent=1 // pred_region
      %51 = dma.done [#allocation4], 1024
    $region33: #{discriminator_forward.1} parent=1 // pred_fallthru
      _
    // Predicated region
    $region34: #{discriminator_forward.1} parent=1 // pred_check
      _
    $region35: #{discriminator_forward.1} parent=1 // pred_check_branch
      %53 = sbr.rel (0) target = $region37
    $region36: #{discriminator_forward.1} parent=1 // pred_region
      %54 = dma.done [#allocation6], 8192
    $region37: #{discriminator_forward.1} parent=1 // pred_fallthru
      _
    %v56 = vld [vmem:[%s0] sm:$0xff]
    %v57 = vld [vmem:[%s1] sm:$0xff]
    %v58 = vlaneseq
    %v59 = vand.u32 %v58, 127
    %60 = vset.pattern.permute.xlu0 0
    %61 = vperm.xlu0 %60, %v57
    %v62 = vpop.permute.xlu0 %61
    %vm63 = vcmp.eq.s32.totalorder %v59, %v62
    %v64 = vsel %vm63, 1, 0
    %v65 = vcvt.s32.f32 %v64
    %67 = vrot.lane.b32.xlu0 %v65, 10
    %v68 = vpop.permute.xlu0 %67
    %vm70 = vcmask 80896
    %v71 = vsel %vm70, %v56, %v68
    %v72 = vld [vmem:[%s5] sm:$0xf]
    %v73 = vld [vmem:[%s5 + $0x4] sm:$0x3]
    %s74 = sld [smem:[#allocation2]]
    %v75 = vpack.c.bf16 %v71, %v71
    %v76 = vld [vmem:[#allocation3] sm:$0xff]
    %v77 = vld [vmem:[#allocation3 + $0x8] sm:$0xff]
    %v78 = vld [vmem:[#allocation3 + $0x10] sm:$0xff]
    %v79 = vld [vmem:[#allocation3 + $0x18] sm:$0xff]
    %v80 = vld [vmem:[#allocation3 + $0x20] sm:$0xff]
    %v81 = vld [vmem:[#allocation3 + $0x28] sm:$0xff]
    %v82 = vld [vmem:[#allocation3 + $0x30] sm:$0xff]
    %v83 = vld [vmem:[#allocation3 + $0x38] sm:$0xff]
    %v85 = vlaneseq
    %v86 = vshrl.u32 %v85, 7
    %v87 = vsub.s32 0, %v86
    %v88 = vrot.slane %v72, %v87
    %v89 = vlaneseq
    %v90 = vshrl.u32 %v89, 7
    %v91 = vsub.s32 1, %v90
    %v92 = vrot.slane %v72, %v91
    %v93 = vlaneseq
    %v94 = vshrl.u32 %v93, 7
    %v95 = vsub.s32 2, %v94
    %v96 = vrot.slane %v72, %v95
    %v97 = vlaneseq
    %v98 = vshrl.u32 %v97, 7
    %v99 = vsub.s32 3, %v98
    %v100 = vrot.slane %v72, %v99
    %v113 = vunpack.c.l.b16 %v76
    %v114 = vunpack.c.h.b16 %v76
    %v115 = vunpack.c.l.b16 %v77
    %v116 = vunpack.c.h.b16 %v77
    %v117 = vunpack.c.l.b16 %v78
    %v118 = vunpack.c.h.b16 %v78
    %v119 = vunpack.c.l.b16 %v79
    %v120 = vunpack.c.h.b16 %v79
    %v121 = vunpack.c.l.b16 %v80
    %v122 = vunpack.c.h.b16 %v80
    %v123 = vunpack.c.l.b16 %v81
    %v124 = vunpack.c.h.b16 %v81
    %v125 = vunpack.c.l.b16 %v82
    %v126 = vunpack.c.h.b16 %v82
    %v127 = vunpack.c.l.b16 %v83
    %v128 = vunpack.c.h.b16 %v83
    %v129 = vpack.c.b16 %v117, %v113
    %v130 = vpack.c.b16 %v118, %v114
    %v131 = vpack.c.b16 %v119, %v115
    %v132 = vpack.c.b16 %v120, %v116
    %v133 = vpack.c.b16 %v125, %v121
    %v134 = vpack.c.b16 %v126, %v122
    %v135 = vpack.c.b16 %v127, %v123
    %v136 = vpack.c.b16 %v128, %v124
    %vm145 = vcmask 261120
    %v147 = vsel %vm145, %v75, 0
    %149 = vmatprep.subr.bf16.mxu0 0
    %150 = vmatpush1.bf16.msra.mxu0 0
    %151 = vmatprep.subr.bf16.mxu0 0
    %152 = vmatpush1.bf16.msra.mxu0 0
    %153 = vmatprep.subr.bf16.mxu0 0
    %154 = vmatpush1.bf16.msra.mxu0 0
    %155 = vmatprep.subr.bf16.mxu0 0
    %156 = vmatpush1.bf16.msra.mxu0 0
    %157 = vmatprep.subr.bf16.mxu0 0
    %158 = vmatpush1.bf16.msra.mxu0 0
    %159 = vmatprep.subr.bf16.mxu0 0
    %160 = vmatpush1.bf16.msra.mxu0 0
    %161 = vmatprep.subr.bf16.mxu0 %v134
    %162 = vmatpush1.bf16.msra.mxu0 %v133
    %163 = vmatprep.subr.bf16.mxu0 %v130
    %164 = vmatpush1.bf16.msra.mxu0 %v129
    %165 = vmatprep.subr.bf16.mxu0 0
    %166 = vmatpush2.bf16.msra.mxu0 0
    %167 = vmatprep.subr.bf16.mxu0 0
    %168 = vmatpush2.bf16.msra.mxu0 0
    %169 = vmatprep.subr.bf16.mxu0 0
    %170 = vmatpush2.bf16.msra.mxu0 0
    %171 = vmatprep.subr.bf16.mxu0 0
    %172 = vmatpush2.bf16.msra.mxu0 0
    %173 = vmatprep.subr.bf16.mxu0 0
    %174 = vmatpush2.bf16.msra.mxu0 0
    %175 = vmatprep.subr.bf16.mxu0 0
    %176 = vmatpush2.bf16.msra.mxu0 0
    %177 = vmatprep.subr.bf16.mxu0 0
    %178 = vmatpush2.bf16.msra.mxu0 0
    %179 = vmatprep.subr.bf16.mxu0 0
    %180 = vmatpush2.bf16.msra.mxu0 0
    %181 = vmatprep.mubr.bf16.mxu0 0
    %182 = vmatmul.mubr.bf16.gmra.mxu0 %v147
    %v183 = vpop.f32.mrf.mxu0
    %v184 = vadd.f32 %v88, %v183
    %v185 = vpop.f32.mrf.mxu0
    %v186 = vadd.f32 %v92, %v185
    %v187 = vpop.f32.mrf.mxu0
    %v188 = vpop.f32.mrf.mxu0
    %189 = vdwg.mxu0
    %190 = vmatprep.subr.bf16.mxu0 0
    %191 = vmatpush1.bf16.msra.mxu0 0
    %192 = vmatprep.subr.bf16.mxu0 0
    %193 = vmatpush1.bf16.msra.mxu0 0
    %194 = vmatprep.subr.bf16.mxu0 0
    %195 = vmatpush1.bf16.msra.mxu0 0
    %196 = vmatprep.subr.bf16.mxu0 0
    %197 = vmatpush1.bf16.msra.mxu0 0
    %198 = vmatprep.subr.bf16.mxu0 0
    %199 = vmatpush1.bf16.msra.mxu0 0
    %200 = vmatprep.subr.bf16.mxu0 0
    %201 = vmatpush1.bf16.msra.mxu0 0
    %202 = vmatprep.subr.bf16.mxu0 %v136
    %203 = vmatpush1.bf16.msra.mxu0 %v135
    %204 = vmatprep.subr.bf16.mxu0 %v132
    %205 = vmatpush1.bf16.msra.mxu0 %v131
    %206 = vmatprep.subr.bf16.mxu0 0
    %207 = vmatpush2.bf16.msra.mxu0 0
    %208 = vmatprep.subr.bf16.mxu0 0
    %209 = vmatpush2.bf16.msra.mxu0 0
    %210 = vmatprep.subr.bf16.mxu0 0
    %211 = vmatpush2.bf16.msra.mxu0 0
    %212 = vmatprep.subr.bf16.mxu0 0
    %213 = vmatpush2.bf16.msra.mxu0 0
    %214 = vmatprep.subr.bf16.mxu0 0
    %215 = vmatpush2.bf16.msra.mxu0 0
    %216 = vmatprep.subr.bf16.mxu0 0
    %217 = vmatpush2.bf16.msra.mxu0 0
    %218 = vmatprep.subr.bf16.mxu0 0
    %219 = vmatpush2.bf16.msra.mxu0 0
    %220 = vmatprep.subr.bf16.mxu0 0
    %221 = vmatpush2.bf16.msra.mxu0 0
    %222 = vmatprep.mubr.bf16.mxu0 0
    %223 = vmatmul.mubr.bf16.gmra.mxu0 %v147
    %v224 = vpop.f32.mrf.mxu0
    %v225 = vadd.f32 %v96, %v224
    %v226 = vpop.f32.mrf.mxu0
    %v227 = vadd.f32 %v100, %v226
    %v228 = vpop.f32.mrf.mxu0
    %v229 = vpop.f32.mrf.mxu0
    %230 = vdwg.mxu0
    %vm231 = vcmp.gt.f32.partialorder %v184, 0.0
    %vm232 = vcmp.gt.f32.partialorder %v186, 0.0
    %vm233 = vcmp.gt.f32.partialorder %v225, 0.0
    %vm234 = vcmp.gt.f32.partialorder %v227, 0.0
    %v235 = vmul.f32 %v184, 0.2
    %v236 = vmul.f32 %v186, 0.2
    %v237 = vmul.f32 %v225, 0.2
    %v238 = vmul.f32 %v227, 0.2
    %v239 = vsel %vm231, %v184, %v235
    %v240 = vsel %vm232, %v186, %v236
    %v241 = vsel %vm233, %v225, %v237
    %v242 = vsel %vm234, %v227, %v238
    %v243 = vpack.c.bf16 %v239, %v239
    %v244 = vpack.c.bf16 %v240, %v240
    %v245 = vpack.c.bf16 %v241, %v241
    %v246 = vpack.c.bf16 %v242, %v242
    %v247 = vld [vmem:[#allocation5] sm:$0xff]
    %v248 = vld [vmem:[#allocation5 + $0x8] sm:$0xff]
    %v249 = vld [vmem:[#allocation5 + $0x10] sm:$0xff]
    %v250 = vld [vmem:[#allocation5 + $0x18] sm:$0xff]
    %v251 = vld [vmem:[#allocation5 + $0x20] sm:$0xff]
    %v252 = vld [vmem:[#allocation5 + $0x28] sm:$0xff]
    %v253 = vld [vmem:[#allocation5 + $0x30] sm:$0xff]
    %v254 = vld [vmem:[#allocation5 + $0x38] sm:$0xff]
    %v255 = vld [vmem:[#allocation5 + $0x40] sm:$0xff]
    %v256 = vld [vmem:[#allocation5 + $0x48] sm:$0xff]
    %v257 = vld [vmem:[#allocation5 + $0x50] sm:$0xff]
    %v258 = vld [vmem:[#allocation5 + $0x58] sm:$0xff]
    %v259 = vld [vmem:[#allocation5 + $0x60] sm:$0xff]
    %v260 = vld [vmem:[#allocation5 + $0x68] sm:$0xff]
    %v261 = vld [vmem:[#allocation5 + $0x70] sm:$0xff]
    %v262 = vld [vmem:[#allocation5 + $0x78] sm:$0xff]
    %v263 = vld [vmem:[#allocation5 + $0x80] sm:$0xff]
    %v264 = vld [vmem:[#allocation5 + $0x88] sm:$0xff]
    %v265 = vld [vmem:[#allocation5 + $0x90] sm:$0xff]
    %v266 = vld [vmem:[#allocation5 + $0x98] sm:$0xff]
    %v267 = vld [vmem:[#allocation5 + $0xa0] sm:$0xff]
    %v268 = vld [vmem:[#allocation5 + $0xa8] sm:$0xff]
    %v269 = vld [vmem:[#allocation5 + $0xb0] sm:$0xff]
    %v270 = vld [vmem:[#allocation5 + $0xb8] sm:$0xff]
    %v271 = vld [vmem:[#allocation5 + $0xc0] sm:$0xff]
    %v272 = vld [vmem:[#allocation5 + $0xc8] sm:$0xff]
    %v273 = vld [vmem:[#allocation5 + $0xd0] sm:$0xff]
    %v274 = vld [vmem:[#allocation5 + $0xd8] sm:$0xff]
    %v275 = vld [vmem:[#allocation5 + $0xe0] sm:$0xff]
    %v276 = vld [vmem:[#allocation5 + $0xe8] sm:$0xff]
    %v277 = vld [vmem:[#allocation5 + $0xf0] sm:$0xff]
    %v278 = vld [vmem:[#allocation5 + $0xf8] sm:$0xff]
    %v279 = vld [vmem:[#allocation5 + $0x100] sm:$0xff]
    %v280 = vld [vmem:[#allocation5 + $0x108] sm:$0xff]
    %v281 = vld [vmem:[#allocation5 + $0x110] sm:$0xff]
    %v282 = vld [vmem:[#allocation5 + $0x118] sm:$0xff]
    %v283 = vld [vmem:[#allocation5 + $0x120] sm:$0xff]
    %v284 = vld [vmem:[#allocation5 + $0x128] sm:$0xff]
    %v285 = vld [vmem:[#allocation5 + $0x130] sm:$0xff]
    %v286 = vld [vmem:[#allocation5 + $0x138] sm:$0xff]
    %v287 = vld [vmem:[#allocation5 + $0x140] sm:$0xff]
    %v288 = vld [vmem:[#allocation5 + $0x148] sm:$0xff]
    %v289 = vld [vmem:[#allocation5 + $0x150] sm:$0xff]
    %v290 = vld [vmem:[#allocation5 + $0x158] sm:$0xff]
    %v291 = vld [vmem:[#allocation5 + $0x160] sm:$0xff]
    %v292 = vld [vmem:[#allocation5 + $0x168] sm:$0xff]
    %v293 = vld [vmem:[#allocation5 + $0x170] sm:$0xff]
    %v294 = vld [vmem:[#allocation5 + $0x178] sm:$0xff]
    %v295 = vld [vmem:[#allocation5 + $0x180] sm:$0xff]
    %v296 = vld [vmem:[#allocation5 + $0x188] sm:$0xff]
    %v297 = vld [vmem:[#allocation5 + $0x190] sm:$0xff]
    %v298 = vld [vmem:[#allocation5 + $0x198] sm:$0xff]
    %v299 = vld [vmem:[#allocation5 + $0x1a0] sm:$0xff]
    %v300 = vld [vmem:[#allocation5 + $0x1a8] sm:$0xff]
    %v301 = vld [vmem:[#allocation5 + $0x1b0] sm:$0xff]
    %v302 = vld [vmem:[#allocation5 + $0x1b8] sm:$0xff]
    %v303 = vld [vmem:[#allocation5 + $0x1c0] sm:$0xff]
    %v304 = vld [vmem:[#allocation5 + $0x1c8] sm:$0xff]
    %v305 = vld [vmem:[#allocation5 + $0x1d0] sm:$0xff]
    %v306 = vld [vmem:[#allocation5 + $0x1d8] sm:$0xff]
    %v307 = vld [vmem:[#allocation5 + $0x1e0] sm:$0xff]
    %v308 = vld [vmem:[#allocation5 + $0x1e8] sm:$0xff]
    %v309 = vld [vmem:[#allocation5 + $0x1f0] sm:$0xff]
    %v310 = vld [vmem:[#allocation5 + $0x1f8] sm:$0xff]
    %v312 = vlaneseq
    %v313 = vshrl.u32 %v312, 7
    %v314 = vsub.s32 0, %v313
    %v315 = vrot.slane %v73, %v314
    %v316 = vlaneseq
    %v317 = vshrl.u32 %v316, 7
    %v318 = vsub.s32 1, %v317
    %v319 = vrot.slane %v73, %v318
    %v386 = vunpack.c.l.b16 %v247
    %v387 = vunpack.c.h.b16 %v247
    %v388 = vunpack.c.l.b16 %v248
    %v389 = vunpack.c.h.b16 %v248
    %v390 = vunpack.c.l.b16 %v249
    %v391 = vunpack.c.h.b16 %v249
    %v392 = vunpack.c.l.b16 %v250
    %v393 = vunpack.c.h.b16 %v250
    %v394 = vunpack.c.l.b16 %v251
    %v395 = vunpack.c.h.b16 %v251
    %v396 = vunpack.c.l.b16 %v252
    %v397 = vunpack.c.h.b16 %v252
    %v398 = vunpack.c.l.b16 %v253
    %v399 = vunpack.c.h.b16 %v253
    %v400 = vunpack.c.l.b16 %v254
    %v401 = vunpack.c.h.b16 %v254
    %v402 = vunpack.c.l.b16 %v255
    %v403 = vunpack.c.h.b16 %v255
    %v404 = vunpack.c.l.b16 %v256
    %v405 = vunpack.c.h.b16 %v256
    %v406 = vunpack.c.l.b16 %v257
    %v407 = vunpack.c.h.b16 %v257
    %v408 = vunpack.c.l.b16 %v258
    %v409 = vunpack.c.h.b16 %v258
    %v410 = vunpack.c.l.b16 %v259
    %v411 = vunpack.c.h.b16 %v259
    %v412 = vunpack.c.l.b16 %v260
    %v413 = vunpack.c.h.b16 %v260
    %v414 = vunpack.c.l.b16 %v261
    %v415 = vunpack.c.h.b16 %v261
    %v416 = vunpack.c.l.b16 %v262
    %v417 = vunpack.c.h.b16 %v262
    %v418 = vunpack.c.l.b16 %v263
    %v419 = vunpack.c.h.b16 %v263
    %v420 = vunpack.c.l.b16 %v264
    %v421 = vunpack.c.h.b16 %v264
    %v422 = vunpack.c.l.b16 %v265
    %v423 = vunpack.c.h.b16 %v265
    %v424 = vunpack.c.l.b16 %v266
    %v425 = vunpack.c.h.b16 %v266
    %v426 = vunpack.c.l.b16 %v267
    %v427 = vunpack.c.h.b16 %v267
    %v428 = vunpack.c.l.b16 %v268
    %v429 = vunpack.c.h.b16 %v268
    %v430 = vunpack.c.l.b16 %v269
    %v431 = vunpack.c.h.b16 %v269
    %v432 = vunpack.c.l.b16 %v270
    %v433 = vunpack.c.h.b16 %v270
    %v434 = vunpack.c.l.b16 %v271
    %v435 = vunpack.c.h.b16 %v271
    %v436 = vunpack.c.l.b16 %v272
    %v437 = vunpack.c.h.b16 %v272
    %v438 = vunpack.c.l.b16 %v273
    %v439 = vunpack.c.h.b16 %v273
    %v440 = vunpack.c.l.b16 %v274
    %v441 = vunpack.c.h.b16 %v274
    %v442 = vunpack.c.l.b16 %v275
    %v443 = vunpack.c.h.b16 %v275
    %v444 = vunpack.c.l.b16 %v276
    %v445 = vunpack.c.h.b16 %v276
    %v446 = vunpack.c.l.b16 %v277
    %v447 = vunpack.c.h.b16 %v277
    %v448 = vunpack.c.l.b16 %v278
    %v449 = vunpack.c.h.b16 %v278
    %v450 = vunpack.c.l.b16 %v279
    %v451 = vunpack.c.h.b16 %v279
    %v452 = vunpack.c.l.b16 %v280
    %v453 = vunpack.c.h.b16 %v280
    %v454 = vunpack.c.l.b16 %v281
    %v455 = vunpack.c.h.b16 %v281
    %v456 = vunpack.c.l.b16 %v282
    %v457 = vunpack.c.h.b16 %v282
    %v458 = vunpack.c.l.b16 %v283
    %v459 = vunpack.c.h.b16 %v283
    %v460 = vunpack.c.l.b16 %v284
    %v461 = vunpack.c.h.b16 %v284
    %v462 = vunpack.c.l.b16 %v285
    %v463 = vunpack.c.h.b16 %v285
    %v464 = vunpack.c.l.b16 %v286
    %v465 = vunpack.c.h.b16 %v286
    %v466 = vunpack.c.l.b16 %v287
    %v467 = vunpack.c.h.b16 %v287
    %v468 = vunpack.c.l.b16 %v288
    %v469 = vunpack.c.h.b16 %v288
    %v470 = vunpack.c.l.b16 %v289
    %v471 = vunpack.c.h.b16 %v289
    %v472 = vunpack.c.l.b16 %v290
    %v473 = vunpack.c.h.b16 %v290
    %v474 = vunpack.c.l.b16 %v291
    %v475 = vunpack.c.h.b16 %v291
    %v476 = vunpack.c.l.b16 %v292
    %v477 = vunpack.c.h.b16 %v292
    %v478 = vunpack.c.l.b16 %v293
    %v479 = vunpack.c.h.b16 %v293
    %v480 = vunpack.c.l.b16 %v294
    %v481 = vunpack.c.h.b16 %v294
    %v482 = vunpack.c.l.b16 %v295
    %v483 = vunpack.c.h.b16 %v295
    %v484 = vunpack.c.l.b16 %v296
    %v485 = vunpack.c.h.b16 %v296
    %v486 = vunpack.c.l.b16 %v297
    %v487 = vunpack.c.h.b16 %v297
    %v488 = vunpack.c.l.b16 %v298
    %v489 = vunpack.c.h.b16 %v298
    %v490 = vunpack.c.l.b16 %v299
    %v491 = vunpack.c.h.b16 %v299
    %v492 = vunpack.c.l.b16 %v300
    %v493 = vunpack.c.h.b16 %v300
    %v494 = vunpack.c.l.b16 %v301
    %v495 = vunpack.c.h.b16 %v301
    %v496 = vunpack.c.l.b16 %v302
    %v497 = vunpack.c.h.b16 %v302
    %v498 = vunpack.c.l.b16 %v303
    %v499 = vunpack.c.h.b16 %v303
    %v500 = vunpack.c.l.b16 %v304
    %v501 = vunpack.c.h.b16 %v304
    %v502 = vunpack.c.l.b16 %v305
    %v503 = vunpack.c.h.b16 %v305
    %v504 = vunpack.c.l.b16 %v306
    %v505 = vunpack.c.h.b16 %v306
    %v506 = vunpack.c.l.b16 %v307
    %v507 = vunpack.c.h.b16 %v307
    %v508 = vunpack.c.l.b16 %v308
    %v509 = vunpack.c.h.b16 %v308
    %v510 = vunpack.c.l.b16 %v309
    %v511 = vunpack.c.h.b16 %v309
    %v512 = vunpack.c.l.b16 %v310
    %v513 = vunpack.c.h.b16 %v310
    %v514 = vpack.c.b16 %v388, %v386
    %v515 = vpack.c.b16 %v389, %v387
    %v516 = vpack.c.b16 %v392, %v390
    %v517 = vpack.c.b16 %v393, %v391
    %v518 = vpack.c.b16 %v396, %v394
    %v519 = vpack.c.b16 %v397, %v395
    %v520 = vpack.c.b16 %v400, %v398
    %v521 = vpack.c.b16 %v401, %v399
    %v522 = vpack.c.b16 %v404, %v402
    %v523 = vpack.c.b16 %v405, %v403
    %v524 = vpack.c.b16 %v408, %v406
    %v525 = vpack.c.b16 %v409, %v407
    %v526 = vpack.c.b16 %v412, %v410
    %v527 = vpack.c.b16 %v413, %v411
    %v528 = vpack.c.b16 %v416, %v414
    %v529 = vpack.c.b16 %v417, %v415
    %v530 = vpack.c.b16 %v420, %v418
    %v531 = vpack.c.b16 %v421, %v419
    %v532 = vpack.c.b16 %v424, %v422
    %v533 = vpack.c.b16 %v425, %v423
    %v534 = vpack.c.b16 %v428, %v426
    %v535 = vpack.c.b16 %v429, %v427
    %v536 = vpack.c.b16 %v432, %v430
    %v537 = vpack.c.b16 %v433, %v431
    %v538 = vpack.c.b16 %v436, %v434
    %v539 = vpack.c.b16 %v437, %v435
    %v540 = vpack.c.b16 %v440, %v438
    %v541 = vpack.c.b16 %v441, %v439
    %v542 = vpack.c.b16 %v444, %v442
    %v543 = vpack.c.b16 %v445, %v443
    %v544 = vpack.c.b16 %v448, %v446
    %v545 = vpack.c.b16 %v449, %v447
    %v546 = vpack.c.b16 %v452, %v450
    %v547 = vpack.c.b16 %v453, %v451
    %v548 = vpack.c.b16 %v456, %v454
    %v549 = vpack.c.b16 %v457, %v455
    %v550 = vpack.c.b16 %v460, %v458
    %v551 = vpack.c.b16 %v461, %v459
    %v552 = vpack.c.b16 %v464, %v462
    %v553 = vpack.c.b16 %v465, %v463
    %v554 = vpack.c.b16 %v468, %v466
    %v555 = vpack.c.b16 %v469, %v467
    %v556 = vpack.c.b16 %v472, %v470
    %v557 = vpack.c.b16 %v473, %v471
    %v558 = vpack.c.b16 %v476, %v474
    %v559 = vpack.c.b16 %v477, %v475
    %v560 = vpack.c.b16 %v480, %v478
    %v561 = vpack.c.b16 %v481, %v479
    %v562 = vpack.c.b16 %v484, %v482
    %v563 = vpack.c.b16 %v485, %v483
    %v564 = vpack.c.b16 %v488, %v486
    %v565 = vpack.c.b16 %v489, %v487
    %v566 = vpack.c.b16 %v492, %v490
    %v567 = vpack.c.b16 %v493, %v491
    %v568 = vpack.c.b16 %v496, %v494
    %v569 = vpack.c.b16 %v497, %v495
    %v570 = vpack.c.b16 %v500, %v498
    %v571 = vpack.c.b16 %v501, %v499
    %v572 = vpack.c.b16 %v504, %v502
    %v573 = vpack.c.b16 %v505, %v503
    %v574 = vpack.c.b16 %v508, %v506
    %v575 = vpack.c.b16 %v509, %v507
    %v576 = vpack.c.b16 %v512, %v510
    %v577 = vpack.c.b16 %v513, %v511
    %642 = vmatprep.subr.bf16.mxu0 %v529
    %643 = vmatpush1.bf16.msra.mxu0 %v528
    %644 = vmatprep.subr.bf16.mxu0 %v527
    %645 = vmatpush1.bf16.msra.mxu0 %v526
    %646 = vmatprep.subr.bf16.mxu0 %v525
    %647 = vmatpush1.bf16.msra.mxu0 %v524
    %648 = vmatprep.subr.bf16.mxu0 %v523
    %649 = vmatpush1.bf16.msra.mxu0 %v522
    %650 = vmatprep.subr.bf16.mxu0 %v521
    %651 = vmatpush1.bf16.msra.mxu0 %v520
    %652 = vmatprep.subr.bf16.mxu0 %v519
    %653 = vmatpush1.bf16.msra.mxu0 %v518
    %654 = vmatprep.subr.bf16.mxu0 %v517
    %655 = vmatpush1.bf16.msra.mxu0 %v516
    %656 = vmatprep.subr.bf16.mxu0 %v515
    %657 = vmatpush1.bf16.msra.mxu0 %v514
    %658 = vmatprep.subr.bf16.mxu0 %v545
    %659 = vmatpush2.bf16.msra.mxu0 %v544
    %660 = vmatprep.subr.bf16.mxu0 %v543
    %661 = vmatpush2.bf16.msra.mxu0 %v542
    %662 = vmatprep.subr.bf16.mxu0 %v541
    %663 = vmatpush2.bf16.msra.mxu0 %v540
    %664 = vmatprep.subr.bf16.mxu0 %v539
    %665 = vmatpush2.bf16.msra.mxu0 %v538
    %666 = vmatprep.subr.bf16.mxu0 %v537
    %667 = vmatpush2.bf16.msra.mxu0 %v536
    %668 = vmatprep.subr.bf16.mxu0 %v535
    %669 = vmatpush2.bf16.msra.mxu0 %v534
    %670 = vmatprep.subr.bf16.mxu0 %v533
    %671 = vmatpush2.bf16.msra.mxu0 %v532
    %672 = vmatprep.subr.bf16.mxu0 %v531
    %673 = vmatpush2.bf16.msra.mxu0 %v530
    %674 = vmatprep.mubr.bf16.mxu0 %v244
    %675 = vmatmul.mubr.bf16.gmra.mxu0 %v243
    %v676 = vpop.f32.mrf.mxu0
    %v677 = vadd.f32 %v315, %v676
    %v678 = vpop.f32.mrf.mxu0
    %v679 = vadd.f32 %v319, %v678
    %v680 = vpop.f32.mrf.mxu0
    %v681 = vpop.f32.mrf.mxu0
    %682 = vdwg.mxu0
    %683 = vmatprep.subr.bf16.mxu0 %v561
    %684 = vmatpush1.bf16.msra.mxu0 %v560
    %685 = vmatprep.subr.bf16.mxu0 %v559
    %686 = vmatpush1.bf16.msra.mxu0 %v558
    %687 = vmatprep.subr.bf16.mxu0 %v557
    %688 = vmatpush1.bf16.msra.mxu0 %v556
    %689 = vmatprep.subr.bf16.mxu0 %v555
    %690 = vmatpush1.bf16.msra.mxu0 %v554
    %691 = vmatprep.subr.bf16.mxu0 %v553
    %692 = vmatpush1.bf16.msra.mxu0 %v552
    %693 = vmatprep.subr.bf16.mxu0 %v551
    %694 = vmatpush1.bf16.msra.mxu0 %v550
    %695 = vmatprep.subr.bf16.mxu0 %v549
    %696 = vmatpush1.bf16.msra.mxu0 %v548
    %697 = vmatprep.subr.bf16.mxu0 %v547
    %698 = vmatpush1.bf16.msra.mxu0 %v546
    %699 = vmatprep.subr.bf16.mxu0 %v577
    %700 = vmatpush2.bf16.msra.mxu0 %v576
    %701 = vmatprep.subr.bf16.mxu0 %v575
    %702 = vmatpush2.bf16.msra.mxu0 %v574
    %703 = vmatprep.subr.bf16.mxu0 %v573
    %704 = vmatpush2.bf16.msra.mxu0 %v572
    %705 = vmatprep.subr.bf16.mxu0 %v571
    %706 = vmatpush2.bf16.msra.mxu0 %v570
    %707 = vmatprep.subr.bf16.mxu0 %v569
    %708 = vmatpush2.bf16.msra.mxu0 %v568
    %709 = vmatprep.subr.bf16.mxu0 %v567
    %710 = vmatpush2.bf16.msra.mxu0 %v566
    %711 = vmatprep.subr.bf16.mxu0 %v565
    %712 = vmatpush2.bf16.msra.mxu0 %v564
    %713 = vmatprep.subr.bf16.mxu0 %v563
    %714 = vmatpush2.bf16.msra.mxu0 %v562
    %715 = vmatprep.mubr.bf16.mxu0 %v246
    %716 = vmatmul.mubr.bf16.gmra.mxu0 %v245
    %v717 = vpop.f32.mrf.mxu0
    %v718 = vadd.f32 %v677, %v717
    %v719 = vpop.f32.mrf.mxu0
    %v720 = vadd.f32 %v679, %v719
    %v721 = vpop.f32.mrf.mxu0
    %v722 = vpop.f32.mrf.mxu0
    %723 = vdwg.mxu0
    %vm724 = vcmp.gt.f32.partialorder %v718, 0.0
    %vm725 = vcmp.gt.f32.partialorder %v720, 0.0
    %v726 = vmul.f32 %v718, 0.2
    %v727 = vmul.f32 %v720, 0.2
    %v728 = vsel %vm724, %v718, %v726
    %v729 = vsel %vm725, %v720, %v727
    %v730 = vld [vmem:[%s4] sm:$0x3]
    %v732 = vlaneseq
    %v733 = vshrl.u32 %v732, 7
    %v734 = vsub.s32 0, %v733
    %v735 = vrot.slane %v730, %v734
    %v736 = vlaneseq
    %v737 = vshrl.u32 %v736, 7
    %v738 = vsub.s32 1, %v737
    %v739 = vrot.slane %v730, %v738
    %v742 = vmul.f32 %v728, %v735
    %v743 = vmul.f32 %v729, %v739
    %v744 = vadd.f32 %v742, %v743
    %745 = vadd.xlane.f32.xlu0 %v744
    %v746 = vpop.xlane.xlu0 %745
    %v747 = vstv %s74
    %v748 = vadd.f32 %v746, %v747
    %v749 = vmul.f32 %v748, 0.5
    %v750 = vtanh.pop %v749
    %v751 = vadd.f32 %v750, 1.0
    %v752 = vmul.f32 %v751, 0.5
    %vm753 = vcmask 7168
    %754 = vst.msk [vmem:[%s7] sm:$0xff] %vm753, %v752
    // Predicated region
    $region38: #{discriminator_forward.1} parent=1 // pred_check
      _
    $region39: #{discriminator_forward.1} parent=1 // pred_check_branch
      %756 = sbr.rel (0) target = $region41
    $region40: #{discriminator_forward.1} parent=1 // pred_region
      _
    $region41: #{discriminator_forward.1} parent=1 // pred_fallthru
      _
    // Predicated region
    $region42: #{discriminator_forward.1} parent=1 // pred_check
      _
    $region43: #{discriminator_forward.1} parent=1 // pred_check_branch
      %758 = sbr.rel (0) target = $region45
    $region44: #{discriminator_forward.1} parent=1 // pred_region
      _
    $region45: #{discriminator_forward.1} parent=1 // pred_fallthru
      _
    %759 = vsyncpa [#allocation4], 1
    %760 = vsyncpa [#allocation6], 1

</llo_original>
